<compile_context>
chip_gen: v7x
topology: tpu7x:2x2x1
jax: 0.10.0
libtpu: 0.0.40
codegen_flags: <defaults>
</compile_context>

<pallas_src>
import functools
import math

import jax
import jax.numpy as jnp
from jax.experimental import pallas as pl
from jax.experimental.pallas import tpu as pltpu


def _round_up(x, m):
    return (x + m - 1) // m * m


def _label_smoothing_kernel(x_ref, tgt_ref, out_ref, *, padding_idx,
                            smooth_val, confidence, conf_logconf, smooth_logsmooth):
    x = x_ref[...].astype(jnp.float32)      # (RT, V) log-probs
    tgt = tgt_ref[...]                      # (RT, 1) int32 labels
    rt, v = x.shape

    cols = jax.lax.broadcasted_iota(jnp.int32, (rt, v), 1)
    one_hot = cols == tgt                                      # scatter(1, target, confidence)
    zero_mask = (cols == padding_idx) | (tgt == padding_idx)   # pad column OR pad-target row

    # Smoothed target distribution t and t*log(t), both built from trace-time constants.
    t = jnp.where(one_hot, jnp.float32(confidence), jnp.float32(smooth_val))
    tlogt = jnp.where(one_hot, jnp.float32(conf_logconf), jnp.float32(smooth_logsmooth))

    # KLDiv elementwise term: t * log t - t * x, zero wherever true_dist == 0.
    contrib = jnp.where(zero_mask, jnp.float32(0.0), tlogt - t * x)

    # Fold the row_tile rows onto 8 sublanes (pure VALU adds, sublane-tiling aligned);
    # the final scalar reduction of the tiny partial-sum slab happens outside the kernel.
    out_ref[...] = contrib.reshape(rt // 8, 8, v).sum(axis=0)


def label_smoothing_loss(x, target, *, size, padding_idx, smoothing=0.0, row_tile=None):
    """x: (N, size) log-probs (f32 or bf16); target: (N,) int labels. Returns scalar f32 loss."""
    n, v = x.shape
    assert v == size
    confidence = 1.0 - smoothing
    smooth_val = smoothing / (v - 2)
    conf_logconf = confidence * math.log(confidence) if confidence > 0.0 else 0.0
    smooth_logsmooth = smooth_val * math.log(smooth_val) if smooth_val > 0.0 else 0.0

    bytes_per_elem = jnp.dtype(x.dtype).itemsize
    if row_tile is None:
        # ~2 MiB of x per block (the BlockSpec pipeline double-buffers it -> ~4 MiB),
        # leaving headroom for elementwise temporaries under the 32 MiB scoped VMEM.
        budget = 2 << 20
        rows_by_budget = (budget // (v * bytes_per_elem)) // 8 * 8
        row_tile = max(8, min(4096, rows_by_budget, _round_up(n, 8)))
    assert row_tile % 8 == 0

    # Pad N up to a multiple of row_tile; padded rows use padding_idx -> contribute 0.
    n_pad = _round_up(n, row_tile)
    tgt2d = target.astype(jnp.int32).reshape(n, 1)
    if n_pad != n:
        x = jnp.pad(x, ((0, n_pad - n), (0, 0)))
        tgt2d = jnp.pad(tgt2d, ((0, n_pad - n), (0, 0)), constant_values=padding_idx)
    num_tiles = n_pad // row_tile

    kernel = functools.partial(
        _label_smoothing_kernel,
        padding_idx=padding_idx,
        smooth_val=smooth_val,
        confidence=confidence,
        conf_logconf=conf_logconf,
        smooth_logsmooth=smooth_logsmooth,
    )

    partials = pl.pallas_call(
        kernel,
        out_shape=jax.ShapeDtypeStruct((num_tiles * 8, v), jnp.float32),
        grid_spec=pltpu.PrefetchScalarGridSpec(
            num_scalar_prefetch=0,
            grid=(num_tiles,),
            in_specs=[
                pl.BlockSpec((row_tile, v), lambda i: (i, 0)),
                pl.BlockSpec((row_tile, 1), lambda i: (i, 0)),
            ],
            out_specs=pl.BlockSpec((8, v), lambda i: (i, 0)),
        ),
        compiler_params=pltpu.CompilerParams(
            dimension_semantics=("parallel",),   # no carried state -> megacore-shardable
            vmem_limit_bytes=32 << 20,           # raise v5e's 16 MiB default; safe on v7x
        ),
    )(x, tgt2d)

    # Single final reduction of the tiny lane-dense partial-sum slab.
    return jnp.sum(partials, dtype=jnp.float32)


def _reference_loss(x, target, size, padding_idx, smoothing):
    # Pure-JAX reference matching the PyTorch module.
    n, v = x.shape
    confidence = 1.0 - smoothing
    smooth_val = smoothing / (v - 2)
    cols = jnp.arange(v)[None, :]
    tgt = target[:, None]
    t = jnp.where(cols == tgt, confidence, smooth_val)
    t = jnp.where(cols == padding_idx, 0.0, t)
    t = jnp.where(tgt == padding_idx, 0.0, t)
    xlogy = jnp.where(t > 0, t * jnp.log(jnp.where(t > 0, t, 1.0)), 0.0)
    return jnp.sum(xlogy - t * x.astype(jnp.float32))


if __name__ == "__main__":
    SIZE = 32          # vocab size (x.size(1))
    PAD = 0            # padding_idx
    SMOOTH = 0.1
    N = 16             # number of token positions

    key = jax.random.PRNGKey(0)
    k_logits, k_tgt = jax.random.split(key)

    logits = jax.random.normal(k_logits, (N, SIZE), dtype=jnp.float32)
    x = jax.nn.log_softmax(logits, axis=-1)          # module expects log-probs
    target = jax.random.randint(k_tgt, (N,), 0, SIZE, dtype=jnp.int32)
    # force a couple of padding targets to exercise the row-masking path
    target = target.at[3].set(PAD).at[7].set(PAD)

    loss = label_smoothing_loss(x, target, size=SIZE, padding_idx=PAD,
                                smoothing=SMOOTH)
    loss = jax.block_until_ready(loss)

    ref = _reference_loss(x, target, SIZE, PAD, SMOOTH)
    assert jnp.allclose(loss, ref, rtol=1e-5, atol=1e-5), (loss, ref)

    print("KERNEL_OK")
</pallas_src>

<mosaic_0001>
module attributes {stable_mosaic.version = 11 : i64} {
  func.func @_label_smoothing_kernel(%arg0: i32, %arg1: memref<16x32xf32, #tpu.memory_space<vmem>>, %arg2: memref<16x1xi32, #tpu.memory_space<vmem>>, %arg3: memref<8x32xf32, #tpu.memory_space<vmem>>) attributes {dimension_semantics = [#tpu.dimension_semantics<parallel>], iteration_bounds = array<i64: 1>, scalar_prefetch = 0 : i64, scratch_operands = 0 : i64, tpu.core_type = #tpu.core_type<tc>, window_params = [{transform_indices = @transform_0, window_bounds = array<i64: 16, 32>}, {transform_indices = @transform_1, window_bounds = array<i64: 16, 1>}, {transform_indices = @transform_2, window_bounds = array<i64: 8, 32>}]} {
    %c0 = arith.constant 0 : index
    %c0_0 = arith.constant 0 : index
    %0 = vector.load %arg1[%c0, %c0_0] : memref<16x32xf32, #tpu.memory_space<vmem>>, vector<16x32xf32>
    %c0_1 = arith.constant 0 : index
    %c0_2 = arith.constant 0 : index
    %1 = vector.load %arg2[%c0_1, %c0_2] : memref<16x1xi32, #tpu.memory_space<vmem>>, vector<16x1xi32>
    %2 = tpu.iota {dimensions = array<i32: 1>} : vector<16x32xi32>
    %3 = vector.broadcast %1 : vector<16x1xi32> to vector<16x32xi32>
    %4 = arith.cmpi eq, %2, %3 : vector<16x32xi32>
    %c0_i32 = arith.constant 0 : i32
    %5 = vector.broadcast %c0_i32 : i32 to vector<16x32xi32>
    %6 = arith.cmpi eq, %2, %5 : vector<16x32xi32>
    %c0_i32_3 = arith.constant 0 : i32
    %7 = vector.broadcast %c0_i32_3 : i32 to vector<16x1xi32>
    %8 = arith.cmpi eq, %1, %7 : vector<16x1xi32>
    %9 = vector.broadcast %8 : vector<16x1xi1> to vector<16x32xi1>
    %10 = arith.ori %6, %9 : vector<16x32xi1>
    %cst = arith.constant 0.899999976 : f32
    %cst_4 = arith.constant 0.00333333341 : f32
    %11 = vector.broadcast %cst : f32 to vector<16x32xf32>
    %12 = vector.broadcast %cst_4 : f32 to vector<16x32xf32>
    %13 = arith.select %4, %11, %12 : vector<16x32xi1>, vector<16x32xf32>
    %cst_5 = arith.constant -0.0948244631 : f32
    %cst_6 = arith.constant -0.0190126076 : f32
    %14 = vector.broadcast %cst_5 : f32 to vector<16x32xf32>
    %15 = vector.broadcast %cst_6 : f32 to vector<16x32xf32>
    %16 = arith.select %4, %14, %15 : vector<16x32xi1>, vector<16x32xf32>
    %17 = arith.mulf %13, %0 : vector<16x32xf32>
    %18 = arith.subf %16, %17 : vector<16x32xf32>
    %cst_7 = arith.constant 0.000000e+00 : f32
    %19 = vector.broadcast %cst_7 : f32 to vector<16x32xf32>
    %20 = arith.select %10, %19, %18 : vector<16x32xi1>, vector<16x32xf32>
    %21 = vector.shape_cast %20 : vector<16x32xf32> to vector<2x8x32xf32>
    %cst_8 = arith.constant dense<0.000000e+00> : vector<8x32xf32>
    %22 = vector.multi_reduction <add>, %21, %cst_8 [0] : vector<2x8x32xf32> to vector<8x32xf32>
    %c0_9 = arith.constant 0 : index
    %c0_10 = arith.constant 0 : index
    %23 = vector.load %arg3[%c0_9, %c0_10] : memref<8x32xf32, #tpu.memory_space<vmem>>, vector<8x32xf32>
    tpu.vector_store %arg3[%c0_9, %c0_10], %22 {strides = array<i32>} : memref<8x32xf32, #tpu.memory_space<vmem>>, vector<8x32xf32>,
    return
  }
  func.func @transform_0(%arg0: i32) -> (i32, i32) {
    %c0_i32 = arith.constant 0 : i32
    %c0_i32_0 = arith.constant 0 : i32
    return %arg0, %c0_i32 : i32, i32
  }
  func.func @transform_1(%arg0: i32) -> (i32, i32) {
    %c0_i32 = arith.constant 0 : i32
    %c0_i32_0 = arith.constant 0 : i32
    return %arg0, %c0_i32 : i32, i32
  }
  func.func @transform_2(%arg0: i32) -> (i32, i32) {
    %c0_i32 = arith.constant 0 : i32
    %c0_i32_0 = arith.constant 0 : i32
    return %arg0, %c0_i32 : i32, i32
  }
}

</mosaic_0001>

<llo_original>
// kernel: tpu_custom_call.1
$region0: #{tpu_custom_call.1}
  #allocation0 [shape = 'u32[]', space=smem, size = 0x4, offset = 0x4, fixed_abs, tag = 'smem constant byte address 0x4 - core index']
  #allocation1 [shape = 'u32[144,128]{1,0:T(1,128)}', space=vmem, size = 0x12000, scoped, tag = 'internal scratch']
  %s0 = inlined_call_operand.vmem [shape: f32[16,32], index: 0, kind: input, shape index: {}]
  %s1 = inlined_call_operand.vmem [shape: s32[16,1], index: 1, kind: input, shape index: {}]
  %s2 = inlined_call_operand.hbm [shape: f32[8,32], index: 2, kind: output, shape index: {}]
  %s3 = sld [smem:[#allocation0]]
  $region18: #{tpu_custom_call.1} parent=0
    _
  %s5 = ssub.s32 1, %s3
  %s6 = scalar_select 0, %s5, %s3
  $region1: #{tpu_custom_call.1} parent=0
    #allocation2 [shape = 'u8[4096]{0}', space=vmem, size = 0x1000, scoped, tag = 'output window, operand 0, single buffered']
    #allocation3 [shape = 's32[1]{0}', space=sflag, size = 0x4, scoped, tag = 'scoped memory for tpu_custom_call.1']
    %7 = vsyncpa [#allocation3], 0
    // Predicated region
    $region2: #{tpu_custom_call.1} parent=1 // pred_check
      _
    $region3: #{tpu_custom_call.1} parent=1 // pred_check_branch
      %9 = sbr.rel (0) target = $region5
    $region4: #{tpu_custom_call.1} parent=1 // pred_region
      _
    $region5: #{tpu_custom_call.1} parent=1 // pred_fallthru
      _
    // Predicated region
    $region6: #{tpu_custom_call.1} parent=1 // pred_check
      _
    $region7: #{tpu_custom_call.1} parent=1 // pred_check_branch
      %11 = sbr.rel (0) target = $region9
    $region8: #{tpu_custom_call.1} parent=1 // pred_region
      _
    $region9: #{tpu_custom_call.1} parent=1 // pred_fallthru
      _
    %v12 = vld [vmem:[%s0] sm:$0xff]
    %v13 = vld [vmem:[%s0 + $0x8] sm:$0xff]
    %v14 = vld [vmem:[%s1] sm:$0xff]
    %v15 = vld [vmem:[%s1 + $0x8] sm:$0xff]
    %v16 = vlaneseq
    %v17 = vand.u32 %v16, 127
    %18 = vset.pattern.permute.xlu0 0
    %19 = vperm.xlu0 %18, %v14
    %v20 = vpop.permute.xlu0 %19
    %21 = vset.pattern.permute.xlu0 0
    %22 = vperm.xlu0 %21, %v15
    %v23 = vpop.permute.xlu0 %22
    %vm24 = vcmp.eq.s32.totalorder %v17, %v20
    %vm25 = vcmp.eq.s32.totalorder %v17, %v23
    %vm26 = vcmp.eq.s32.totalorder %v17, 0
    %vm27 = vcmp.eq.s32.totalorder %v14, 0
    %vm28 = vcmp.eq.s32.totalorder %v15, 0
    %v29 = vsel %vm27, 1, 0
    %v30 = vsel %vm28, 1, 0
    %31 = vset.pattern.permute.xlu0 0
    %32 = vperm.xlu0 %31, %v29
    %v33 = vpop.permute.xlu0 %32
    %34 = vset.pattern.permute.xlu0 0
    %35 = vperm.xlu0 %34, %v30
    %v36 = vpop.permute.xlu0 %35
    %vm37 = vcmp.eq.s32.totalorder %v33, 1
    %vm38 = vcmp.eq.s32.totalorder %v36, 1
    %vm39 = vmor %vm26, %vm37
    %vm40 = vmor %vm26, %vm38
    %v41 = vsel %vm24, 0.9, 0.0033333334
    %v42 = vsel %vm25, 0.9, 0.0033333334
    %v43 = vsel %vm24, -0.09482446, -0.019012608
    %v44 = vsel %vm25, -0.09482446, -0.019012608
    %v45 = vmul.f32 %v41, %v12
    %v46 = vmul.f32 %v42, %v13
    %v47 = vsub.f32 %v43, %v45
    %v48 = vsub.f32 %v44, %v46
    %v49 = vsel %vm39, 0.0, %v47
    %v50 = vsel %vm40, 0.0, %v48
    %vm51 = vcmask 261120
    %v52 = vsel %vm51, %v49, 0.0
    %v53 = vsel %vm51, %v50, 0.0
    %v54 = vadd.f32 %v52, %v53
    %55 = vst.msk [vmem:[#allocation2] sm:$0xff] %vm51, %v54
    // Predicated region
    $region10: #{tpu_custom_call.1} parent=1 // pred_check
      _
    $region11: #{tpu_custom_call.1} parent=1 // pred_check_branch
      %57 = sbr.rel (0) target = $region13
    $region12: #{tpu_custom_call.1} parent=1 // pred_region
      %s59 = ssub.s32 128, 128
      %60 = vsyncadd [#allocation3], %s59
      %s62 = sshll.u32 [#allocation2], 4
      %s63 = int_to_ptr.vmem [resolvable:$true] %s62
      %65 = dma.vmem_to_hbm [thread:$0]  %s63, 128, %s2, [#allocation3]
    $region13: #{tpu_custom_call.1} parent=1 // pred_fallthru
      _
    // Predicated region
    $region14: #{tpu_custom_call.1} parent=1 // pred_check
      _
    $region15: #{tpu_custom_call.1} parent=1 // pred_check_branch
      %67 = sbr.rel (0) target = $region17
    $region16: #{tpu_custom_call.1} parent=1 // pred_region
      %68 = dma.done [#allocation3], 128
    $region17: #{tpu_custom_call.1} parent=1 // pred_fallthru
      _
    %69 = vsyncpa [#allocation3], 1

</llo_original>
